<compile_context>
chip_gen: v7x
topology: tpu7x:2x2x1
jax: 0.10.0
libtpu: 0.0.40
codegen_flags: <defaults>
</compile_context>

<pallas_src>
import math
import jax
import jax.numpy as jnp
from jax.experimental import pallas as pl
from jax.experimental.pallas import tpu as pltpu


def make_mha_kernel(D: int, d_k: int, n_heads: int, keep_attn: bool):
    def kernel(x_ref, wqkv_ref, bqkv_ref, wout_ref, bout_ref, o_ref, *rest):
        if keep_attn:
            attn_ref, qkv_s = rest
        else:
            (qkv_s,) = rest
        h = pl.program_id(1)

        # ---- full-width QKV projection, once per batch element (h == 0) ----
        @pl.when(h == 0)
        def _project_qkv():
            qkv = jnp.dot(x_ref[...], wqkv_ref[...],
                          preferred_element_type=jnp.float32)        # (S, 3D) f32
            qkv = (qkv + bqkv_ref[...]).astype(jnp.bfloat16)          # (S, 3D) bf16
            # Scatter into head-major scratch (3H, S, d_k), ordered
            # [q_h0..q_h{H-1} | k_h0..k_h{H-1} | v_h0..v_h{H-1}].
            for c in range(3):                                        # static unroll
                for hh in range(n_heads):
                    col = c * D + hh * d_k
                    qkv_s[c * n_heads + hh] = qkv[:, col:col + d_k]

        # Per-head views: dynamic leading-dim index only (no lane slicing).
        q = qkv_s[h]                 # (S, d_k) bf16, Q pre-scaled by 1/sqrt(d_k)
        k = qkv_s[n_heads + h]       # (S, d_k) bf16
        v = qkv_s[2 * n_heads + h]   # (S, d_k) bf16

        # ---- scores = q @ k^T : MXU "NT" contraction over d_k, f32 accumulate ----
        scores = jax.lax.dot_general(
            q, k, dimension_numbers=(((1,), (1,)), ((), ())),
            preferred_element_type=jnp.float32)                       # (S, S) f32

        # ---- softmax over last axis (f32); denom via EUP approx reciprocal ----
        m = jnp.max(scores, axis=-1, keepdims=True)
        e = jnp.exp(scores - m)
        denom = jnp.sum(e, axis=-1, keepdims=True)
        attn = e * pl.reciprocal(denom, approx=True)                  # (S, S) f32

        p = attn.astype(jnp.bfloat16)                                 # MXU operand
        if keep_attn:
            attn_ref[...] = p        # bf16 writeback halves dominant HBM stream

        # ---- attn_output_h = attn @ v : (S, S) @ (S, d_k) ----
        out_h = jnp.dot(p, v, preferred_element_type=jnp.float32)     # (S, d_k) f32

        # ---- per-head slice of the output projection, accumulated over heads ----
        contrib = jnp.dot(out_h.astype(jnp.bfloat16), wout_ref[h],
                          preferred_element_type=jnp.float32)         # (S, D) f32

        @pl.when(h == 0)
        def _init():
            o_ref[...] = contrib + bout_ref[...]                      # bias exactly once

        @pl.when(h != 0)
        def _acc():
            o_ref[...] = o_ref[...] + contrib

    return kernel


def multi_headed_attention(x, w_qkv, b_qkv, w_out, b_out, *, n_heads: int,
                           keep_attn_weights: bool = True):
    B, S, D = x.shape
    assert D % n_heads == 0, "'input_dim' must be divisible by 'n_heads'"
    d_k = D // n_heads
    scale = 1.0 / math.sqrt(d_k)

    # ---------------- host-side parameter prep ----------------
    # Fold the 1/sqrt(d_k) score scale into the Q projection (weights + bias).
    w32 = w_qkv.astype(jnp.float32).at[:, :D].multiply(scale)
    b32 = b_qkv.astype(jnp.float32).at[:, :D].multiply(scale)
    wqkv_bf = w32.astype(jnp.bfloat16)                                 # (D, 3D)
    bqkv = b32                                                         # (1, 3D) f32
    # W_out rows grouped per head: (H, d_k, D).
    wout_h = w_out.astype(jnp.float32).reshape(n_heads, d_k, D).astype(jnp.bfloat16)
    bout = b_out.astype(jnp.float32)                                   # (1, D) f32
    x_bf = x.astype(jnp.bfloat16)                                      # halves activation DMA

    out_shapes = [jax.ShapeDtypeStruct((B, S, D), jnp.float32)]
    out_specs = [pl.BlockSpec((None, S, D), lambda b, h: (b, 0, 0))]
    if keep_attn_weights:
        out_shapes.append(jax.ShapeDtypeStruct((B, n_heads, S, S), jnp.bfloat16))
        out_specs.append(pl.BlockSpec((None, None, S, S), lambda b, h: (b, h, 0, 0)))

    # VMEM budget: double-buffered blocks + scratch + softmax temporaries, +25%,
    # clamped to [32 MiB, 64 MiB] (64 MiB = v7x physical per-TC VMEM).
    mib = 1 << 20
    est = (2 * S * D * 2                                   # x block (bf16)
           + 2 * D * 3 * D * 2 + 2 * 3 * D * 4             # W_qkv / b_qkv
           + 2 * n_heads * d_k * D * 2 + 2 * D * 4         # W_out / b_out
           + 2 * S * D * 4                                 # o block (f32)
           + (2 * S * S * 2 if keep_attn_weights else 0)   # attn block (bf16)
           + 3 * n_heads * S * max(d_k, 128) * 2           # qkv scratch (lane-padded)
           + 4 * S * S * 4                                 # softmax temporaries
           + S * 3 * D * 4)                                # full-width qkv temp at h==0
    vmem_limit = int(min(max(int(est * 1.25), 32 * mib), 64 * mib))

    kernel = make_mha_kernel(D, d_k, n_heads, keep_attn_weights)

    results = pl.pallas_call(
        kernel,
        out_shape=tuple(out_shapes),
        grid=(B, n_heads),
        in_specs=[
            pl.BlockSpec((None, S, D), lambda b, h: (b, 0, 0)),        # x (per batch)
            pl.BlockSpec((D, 3 * D), lambda b, h: (0, 0)),             # W_qkv (hoisted)
            pl.BlockSpec((1, 3 * D), lambda b, h: (0, 0)),             # b_qkv (hoisted)
            pl.BlockSpec((n_heads, d_k, D), lambda b, h: (0, 0, 0)),   # W_out (hoisted)
            pl.BlockSpec((1, D), lambda b, h: (0, 0)),                 # b_out (hoisted)
        ],
        out_specs=tuple(out_specs),
        scratch_shapes=[pltpu.VMEM((3 * n_heads, S, d_k), jnp.bfloat16)],
        compiler_params=pltpu.CompilerParams(
            dimension_semantics=("parallel", "arbitrary"),
            vmem_limit_bytes=vmem_limit),
    )(x_bf, wqkv_bf, bqkv, wout_h, bout)

    if keep_attn_weights:
        return results[0], results[1]
    return results[0]


def reference(x, w_qkv, b_qkv, w_out, b_out, *, n_heads: int):
    """Plain-JAX f32 reference mirroring the PyTorch forward."""
    B, S, D = x.shape
    d_k = D // n_heads
    qkv = x @ w_qkv + b_qkv[0]                    # (B, S, 3D)
    q, k, v = jnp.split(qkv, 3, axis=2)

    def to_heads(t):
        return t.reshape(B, S, n_heads, d_k).transpose(0, 2, 1, 3)

    q, k, v = map(to_heads, (q, k, v))
    scores = jnp.einsum('bhsd,bhld->bhsl', q, k) / math.sqrt(d_k)
    attn = jax.nn.softmax(scores, axis=-1)
    out = jnp.einsum('bhsl,bhld->bhsd', attn, v)
    out = out.transpose(0, 2, 1, 3).reshape(B, S, D)
    return out @ w_out + b_out[0], attn


if __name__ == "__main__":
    B, S, D, H = 2, 8, 32, 4          # batch, seq, input_dim, n_heads

    key = jax.random.PRNGKey(0)
    kx, k1, k2, k3, k4 = jax.random.split(key, 5)

    x = jax.random.normal(kx, (B, S, D), dtype=jnp.float32)

    # Deterministic synthetic parameters (PyTorch-Linear-like scale).
    lim_in = 1.0 / math.sqrt(D)
    w_qkv = jax.random.uniform(k1, (D, 3 * D), jnp.float32, -lim_in, lim_in)
    b_qkv = jax.random.uniform(k2, (1, 3 * D), jnp.float32, -lim_in, lim_in)
    w_out = jax.random.uniform(k3, (D, D), jnp.float32, -lim_in, lim_in)
    b_out = jax.random.uniform(k4, (1, D), jnp.float32, -lim_in, lim_in)

    out, attn = multi_headed_attention(x, w_qkv, b_qkv, w_out, b_out,
                                       n_heads=H, keep_attn_weights=True)
    jax.block_until_ready((out, attn))

    ref_out, ref_attn = reference(x, w_qkv, b_qkv, w_out, b_out, n_heads=H)
    # bf16 MXU operands, bf16 attn writeback and approx reciprocal
    # => relaxed tolerances vs pure-f32 reference.
    assert jnp.allclose(out, ref_out, atol=5e-2, rtol=5e-2), \
        float(jnp.max(jnp.abs(out - ref_out)))
    attn_f32 = attn.astype(jnp.float32)
    assert jnp.allclose(attn_f32, ref_attn, atol=3e-2, rtol=3e-2), \
        float(jnp.max(jnp.abs(attn_f32 - ref_attn)))

    print("KERNEL_OK")
</pallas_src>

<mosaic_0001>
module attributes {stable_mosaic.version = 11 : i64} {
  func.func @kernel(%arg0: i32, %arg1: i32, %arg2: memref<1x8x32xbf16, #tpu.memory_space<vmem>>, %arg3: memref<32x96xbf16, #tpu.memory_space<vmem>>, %arg4: memref<1x96xf32, #tpu.memory_space<vmem>>, %arg5: memref<4x8x32xbf16, #tpu.memory_space<vmem>>, %arg6: memref<1x32xf32, #tpu.memory_space<vmem>>, %arg7: memref<1x8x32xf32, #tpu.memory_space<vmem>>, %arg8: memref<1x1x8x8xbf16, #tpu.memory_space<vmem>>, %arg9: memref<12x8x8xbf16, #tpu.memory_space<vmem>>) attributes {dimension_semantics = [#tpu.dimension_semantics<parallel>, #tpu.dimension_semantics<arbitrary>], iteration_bounds = array<i64: 2, 4>, scalar_prefetch = 0 : i64, scratch_operands = 1 : i64, tpu.core_type = #tpu.core_type<tc>, window_params = [{transform_indices = @transform_0, window_bounds = array<i64: 1, 8, 32>}, {pipeline_mode = #tpu.pipeline_mode<synchronous>, transform_indices = @transform_1, window_bounds = array<i64: 32, 96>}, {pipeline_mode = #tpu.pipeline_mode<synchronous>, transform_indices = @transform_2, window_bounds = array<i64: 1, 96>}, {pipeline_mode = #tpu.pipeline_mode<synchronous>, transform_indices = @transform_3, window_bounds = array<i64: 4, 8, 32>}, {pipeline_mode = #tpu.pipeline_mode<synchronous>, transform_indices = @transform_4, window_bounds = array<i64: 1, 32>}, {transform_indices = @transform_5, window_bounds = array<i64: 1, 8, 32>}, {transform_indices = @transform_6, window_bounds = array<i64: 1, 1, 8, 8>}]} {
    %c0_i32 = arith.constant 0 : i32
    %0 = arith.cmpi eq, %arg1, %c0_i32 : i32
    %1 = arith.extui %0 : i1 to i32
    %c0_i32_0 = arith.constant 0 : i32
    %2 = arith.cmpi ne, %1, %c0_i32_0 : i32
    scf.if %2 {
      %c0_20 = arith.constant 0 : index
      %c0_21 = arith.constant 0 : index
      %c0_22 = arith.constant 0 : index
      %41 = vector.load %arg2[%c0_20, %c0_21, %c0_22] : memref<1x8x32xbf16, #tpu.memory_space<vmem>>, vector<1x8x32xbf16>
      %42 = vector.shape_cast %41 : vector<1x8x32xbf16> to vector<8x32xbf16>
      %c0_23 = arith.constant 0 : index
      %c0_24 = arith.constant 0 : index
      %43 = vector.load %arg3[%c0_23, %c0_24] : memref<32x96xbf16, #tpu.memory_space<vmem>>, vector<32x96xbf16>
      %cst_25 = arith.constant dense<0.000000e+00> : vector<8x96xf32>
      %44 = tpu.matmul %42, %43, %cst_25 {dimension_numbers = #tpu.dot_dimension_numbers<[1], [0], [0], [1], [0, 0, 1, 1], [], []>} : vector<8x32xbf16>, vector<32x96xbf16>, vector<8x96xf32> -> vector<8x96xf32>
      %c0_26 = arith.constant 0 : index
      %c0_27 = arith.constant 0 : index
      %45 = vector.load %arg4[%c0_26, %c0_27] : memref<1x96xf32, #tpu.memory_space<vmem>>, vector<1x96xf32>
      %46 = vector.broadcast %45 : vector<1x96xf32> to vector<8x96xf32>
      %47 = arith.addf %44, %46 : vector<8x96xf32>
      %48 = arith.truncf %47 : vector<8x96xf32> to vector<8x96xbf16>
      %49 = vector.extract_strided_slice %48 {offsets = [0, 0], sizes = [8, 8], strides = [1, 1]} : vector<8x96xbf16> to vector<8x8xbf16>
      %c0_28 = arith.constant 0 : index
      %c0_29 = arith.constant 0 : index
      %c0_30 = arith.constant 0 : index
      %50 = vector.load %arg9[%c0_28, %c0_29, %c0_30] : memref<12x8x8xbf16, #tpu.memory_space<vmem>>, vector<1x8x8xbf16>
      %51 = vector.shape_cast %50 : vector<1x8x8xbf16> to vector<8x8xbf16>
      %52 = vector.shape_cast %49 : vector<8x8xbf16> to vector<1x8x8xbf16>
      tpu.vector_store %arg9[%c0_28, %c0_29, %c0_30], %52 {strides = array<i32>} : memref<12x8x8xbf16, #tpu.memory_space<vmem>>, vector<1x8x8xbf16>,
      %53 = vector.extract_strided_slice %48 {offsets = [0, 8], sizes = [8, 8], strides = [1, 1]} : vector<8x96xbf16> to vector<8x8xbf16>
      %c1 = arith.constant 1 : index
      %c0_31 = arith.constant 0 : index
      %c0_32 = arith.constant 0 : index
      %54 = vector.load %arg9[%c1, %c0_31, %c0_32] : memref<12x8x8xbf16, #tpu.memory_space<vmem>>, vector<1x8x8xbf16>
      %55 = vector.shape_cast %54 : vector<1x8x8xbf16> to vector<8x8xbf16>
      %56 = vector.shape_cast %53 : vector<8x8xbf16> to vector<1x8x8xbf16>
      tpu.vector_store %arg9[%c1, %c0_31, %c0_32], %56 {strides = array<i32>} : memref<12x8x8xbf16, #tpu.memory_space<vmem>>, vector<1x8x8xbf16>,
      %57 = vector.extract_strided_slice %48 {offsets = [0, 16], sizes = [8, 8], strides = [1, 1]} : vector<8x96xbf16> to vector<8x8xbf16>
      %c2 = arith.constant 2 : index
      %c0_33 = arith.constant 0 : index
      %c0_34 = arith.constant 0 : index
      %58 = vector.load %arg9[%c2, %c0_33, %c0_34] : memref<12x8x8xbf16, #tpu.memory_space<vmem>>, vector<1x8x8xbf16>
      %59 = vector.shape_cast %58 : vector<1x8x8xbf16> to vector<8x8xbf16>
      %60 = vector.shape_cast %57 : vector<8x8xbf16> to vector<1x8x8xbf16>
      tpu.vector_store %arg9[%c2, %c0_33, %c0_34], %60 {strides = array<i32>} : memref<12x8x8xbf16, #tpu.memory_space<vmem>>, vector<1x8x8xbf16>,
      %61 = vector.extract_strided_slice %48 {offsets = [0, 24], sizes = [8, 8], strides = [1, 1]} : vector<8x96xbf16> to vector<8x8xbf16>
      %c3 = arith.constant 3 : index
      %c0_35 = arith.constant 0 : index
      %c0_36 = arith.constant 0 : index
      %62 = vector.load %arg9[%c3, %c0_35, %c0_36] : memref<12x8x8xbf16, #tpu.memory_space<vmem>>, vector<1x8x8xbf16>
      %63 = vector.shape_cast %62 : vector<1x8x8xbf16> to vector<8x8xbf16>
      %64 = vector.shape_cast %61 : vector<8x8xbf16> to vector<1x8x8xbf16>
      tpu.vector_store %arg9[%c3, %c0_35, %c0_36], %64 {strides = array<i32>} : memref<12x8x8xbf16, #tpu.memory_space<vmem>>, vector<1x8x8xbf16>,
      %65 = vector.extract_strided_slice %48 {offsets = [0, 32], sizes = [8, 8], strides = [1, 1]} : vector<8x96xbf16> to vector<8x8xbf16>
      %c4 = arith.constant 4 : index
      %c0_37 = arith.constant 0 : index
      %c0_38 = arith.constant 0 : index
      %66 = vector.load %arg9[%c4, %c0_37, %c0_38] : memref<12x8x8xbf16, #tpu.memory_space<vmem>>, vector<1x8x8xbf16>
      %67 = vector.shape_cast %66 : vector<1x8x8xbf16> to vector<8x8xbf16>
      %68 = vector.shape_cast %65 : vector<8x8xbf16> to vector<1x8x8xbf16>
      tpu.vector_store %arg9[%c4, %c0_37, %c0_38], %68 {strides = array<i32>} : memref<12x8x8xbf16, #tpu.memory_space<vmem>>, vector<1x8x8xbf16>,
      %69 = vector.extract_strided_slice %48 {offsets = [0, 40], sizes = [8, 8], strides = [1, 1]} : vector<8x96xbf16> to vector<8x8xbf16>
      %c5 = arith.constant 5 : index
      %c0_39 = arith.constant 0 : index
      %c0_40 = arith.constant 0 : index
      %70 = vector.load %arg9[%c5, %c0_39, %c0_40] : memref<12x8x8xbf16, #tpu.memory_space<vmem>>, vector<1x8x8xbf16>
      %71 = vector.shape_cast %70 : vector<1x8x8xbf16> to vector<8x8xbf16>
      %72 = vector.shape_cast %69 : vector<8x8xbf16> to vector<1x8x8xbf16>
      tpu.vector_store %arg9[%c5, %c0_39, %c0_40], %72 {strides = array<i32>} : memref<12x8x8xbf16, #tpu.memory_space<vmem>>, vector<1x8x8xbf16>,
      %73 = vector.extract_strided_slice %48 {offsets = [0, 48], sizes = [8, 8], strides = [1, 1]} : vector<8x96xbf16> to vector<8x8xbf16>
      %c6 = arith.constant 6 : index
      %c0_41 = arith.constant 0 : index
      %c0_42 = arith.constant 0 : index
      %74 = vector.load %arg9[%c6, %c0_41, %c0_42] : memref<12x8x8xbf16, #tpu.memory_space<vmem>>, vector<1x8x8xbf16>
      %75 = vector.shape_cast %74 : vector<1x8x8xbf16> to vector<8x8xbf16>
      %76 = vector.shape_cast %73 : vector<8x8xbf16> to vector<1x8x8xbf16>
      tpu.vector_store %arg9[%c6, %c0_41, %c0_42], %76 {strides = array<i32>} : memref<12x8x8xbf16, #tpu.memory_space<vmem>>, vector<1x8x8xbf16>,
      %77 = vector.extract_strided_slice %48 {offsets = [0, 56], sizes = [8, 8], strides = [1, 1]} : vector<8x96xbf16> to vector<8x8xbf16>
      %c7 = arith.constant 7 : index
      %c0_43 = arith.constant 0 : index
      %c0_44 = arith.constant 0 : index
      %78 = vector.load %arg9[%c7, %c0_43, %c0_44] : memref<12x8x8xbf16, #tpu.memory_space<vmem>>, vector<1x8x8xbf16>
      %79 = vector.shape_cast %78 : vector<1x8x8xbf16> to vector<8x8xbf16>
      %80 = vector.shape_cast %77 : vector<8x8xbf16> to vector<1x8x8xbf16>
      tpu.vector_store %arg9[%c7, %c0_43, %c0_44], %80 {strides = array<i32>} : memref<12x8x8xbf16, #tpu.memory_space<vmem>>, vector<1x8x8xbf16>,
      %81 = vector.extract_strided_slice %48 {offsets = [0, 64], sizes = [8, 8], strides = [1, 1]} : vector<8x96xbf16> to vector<8x8xbf16>
      %c8 = arith.constant 8 : index
      %c0_45 = arith.constant 0 : index
      %c0_46 = arith.constant 0 : index
      %82 = vector.load %arg9[%c8, %c0_45, %c0_46] : memref<12x8x8xbf16, #tpu.memory_space<vmem>>, vector<1x8x8xbf16>
      %83 = vector.shape_cast %82 : vector<1x8x8xbf16> to vector<8x8xbf16>
      %84 = vector.shape_cast %81 : vector<8x8xbf16> to vector<1x8x8xbf16>
      tpu.vector_store %arg9[%c8, %c0_45, %c0_46], %84 {strides = array<i32>} : memref<12x8x8xbf16, #tpu.memory_space<vmem>>, vector<1x8x8xbf16>,
      %85 = vector.extract_strided_slice %48 {offsets = [0, 72], sizes = [8, 8], strides = [1, 1]} : vector<8x96xbf16> to vector<8x8xbf16>
      %c9 = arith.constant 9 : index
      %c0_47 = arith.constant 0 : index
      %c0_48 = arith.constant 0 : index
      %86 = vector.load %arg9[%c9, %c0_47, %c0_48] : memref<12x8x8xbf16, #tpu.memory_space<vmem>>, vector<1x8x8xbf16>
      %87 = vector.shape_cast %86 : vector<1x8x8xbf16> to vector<8x8xbf16>
      %88 = vector.shape_cast %85 : vector<8x8xbf16> to vector<1x8x8xbf16>
      tpu.vector_store %arg9[%c9, %c0_47, %c0_48], %88 {strides = array<i32>} : memref<12x8x8xbf16, #tpu.memory_space<vmem>>, vector<1x8x8xbf16>,
      %89 = vector.extract_strided_slice %48 {offsets = [0, 80], sizes = [8, 8], strides = [1, 1]} : vector<8x96xbf16> to vector<8x8xbf16>
      %c10 = arith.constant 10 : index
      %c0_49 = arith.constant 0 : index
      %c0_50 = arith.constant 0 : index
      %90 = vector.load %arg9[%c10, %c0_49, %c0_50] : memref<12x8x8xbf16, #tpu.memory_space<vmem>>, vector<1x8x8xbf16>
      %91 = vector.shape_cast %90 : vector<1x8x8xbf16> to vector<8x8xbf16>
      %92 = vector.shape_cast %89 : vector<8x8xbf16> to vector<1x8x8xbf16>
      tpu.vector_store %arg9[%c10, %c0_49, %c0_50], %92 {strides = array<i32>} : memref<12x8x8xbf16, #tpu.memory_space<vmem>>, vector<1x8x8xbf16>,
      %93 = vector.extract_strided_slice %48 {offsets = [0, 88], sizes = [8, 8], strides = [1, 1]} : vector<8x96xbf16> to vector<8x8xbf16>
      %c11 = arith.constant 11 : index
      %c0_51 = arith.constant 0 : index
      %c0_52 = arith.constant 0 : index
      %94 = vector.load %arg9[%c11, %c0_51, %c0_52] : memref<12x8x8xbf16, #tpu.memory_space<vmem>>, vector<1x8x8xbf16>
      %95 = vector.shape_cast %94 : vector<1x8x8xbf16> to vector<8x8xbf16>
      %96 = vector.shape_cast %93 : vector<8x8xbf16> to vector<1x8x8xbf16>
      tpu.vector_store %arg9[%c11, %c0_51, %c0_52], %96 {strides = array<i32>} : memref<12x8x8xbf16, #tpu.memory_space<vmem>>, vector<1x8x8xbf16>,
    } else {
    }
    %3 = arith.index_cast %arg1 : i32 to index
    %c0 = arith.constant 0 : index
    %c0_1 = arith.constant 0 : index
    %4 = vector.load %arg9[%3, %c0, %c0_1] : memref<12x8x8xbf16, #tpu.memory_space<vmem>>, vector<1x8x8xbf16>
    %5 = vector.shape_cast %4 : vector<1x8x8xbf16> to vector<8x8xbf16>
    %c4_i32 = arith.constant 4 : i32
    %6 = arith.addi %c4_i32, %arg1 : i32
    %7 = arith.index_cast %6 : i32 to index
    %c0_2 = arith.constant 0 : index
    %c0_3 = arith.constant 0 : index
    %8 = vector.load %arg9[%7, %c0_2, %c0_3] : memref<12x8x8xbf16, #tpu.memory_space<vmem>>, vector<1x8x8xbf16>
    %9 = vector.shape_cast %8 : vector<1x8x8xbf16> to vector<8x8xbf16>
    %c8_i32 = arith.constant 8 : i32
    %10 = arith.addi %c8_i32, %arg1 : i32
    %11 = arith.index_cast %10 : i32 to index
    %c0_4 = arith.constant 0 : index
    %c0_5 = arith.constant 0 : index
    %12 = vector.load %arg9[%11, %c0_4, %c0_5] : memref<12x8x8xbf16, #tpu.memory_space<vmem>>, vector<1x8x8xbf16>
    %13 = vector.shape_cast %12 : vector<1x8x8xbf16> to vector<8x8xbf16>
    %cst = arith.constant dense<0.000000e+00> : vector<8x8xf32>
    %14 = tpu.matmul %5, %9, %cst {dimension_numbers = #tpu.dot_dimension_numbers<[1], [1], [0], [0], [0, 0, 1, 0], [], []>} : vector<8x8xbf16>, vector<8x8xbf16>, vector<8x8xf32> -> vector<8x8xf32>
    %cst_6 = arith.constant dense<0xFF800000> : vector<8xf32>
    %15 = vector.multi_reduction <maximumf>, %14, %cst_6 [1] : vector<8x8xf32> to vector<8xf32>
    %16 = vector.shape_cast %15 : vector<8xf32> to vector<8x1xf32>
    %17 = vector.broadcast %16 : vector<8x1xf32> to vector<8x8xf32>
    %18 = arith.subf %14, %17 : vector<8x8xf32>
    %19 = math.exp %18 : vector<8x8xf32>
    %cst_7 = arith.constant dense<0.000000e+00> : vector<8xf32>
    %20 = vector.multi_reduction <add>, %19, %cst_7 [1] : vector<8x8xf32> to vector<8xf32>
    %21 = vector.shape_cast %20 : vector<8xf32> to vector<8x1xf32>
    %22 = tpu.reciprocal %21 {approx = true} : vector<8x1xf32> -> vector<8x1xf32>
    %23 = vector.broadcast %22 : vector<8x1xf32> to vector<8x8xf32>
    %24 = arith.mulf %19, %23 : vector<8x8xf32>
    %25 = arith.truncf %24 : vector<8x8xf32> to vector<8x8xbf16>
    %c0_8 = arith.constant 0 : index
    %c0_9 = arith.constant 0 : index
    %c0_10 = arith.constant 0 : index
    %c0_11 = arith.constant 0 : index
    %26 = vector.load %arg8[%c0_8, %c0_9, %c0_10, %c0_11] : memref<1x1x8x8xbf16, #tpu.memory_space<vmem>>, vector<1x1x8x8xbf16>
    %27 = vector.shape_cast %26 : vector<1x1x8x8xbf16> to vector<8x8xbf16>
    %28 = vector.shape_cast %25 : vector<8x8xbf16> to vector<1x1x8x8xbf16>
    tpu.vector_store %arg8[%c0_8, %c0_9, %c0_10, %c0_11], %28 {strides = array<i32>} : memref<1x1x8x8xbf16, #tpu.memory_space<vmem>>, vector<1x1x8x8xbf16>,
    %cst_12 = arith.constant dense<0.000000e+00> : vector<8x8xf32>
    %29 = tpu.matmul %25, %13, %cst_12 {dimension_numbers = #tpu.dot_dimension_numbers<[1], [0], [0], [1], [0, 0, 1, 1], [], []>} : vector<8x8xbf16>, vector<8x8xbf16>, vector<8x8xf32> -> vector<8x8xf32>
    %30 = arith.truncf %29 : vector<8x8xf32> to vector<8x8xbf16>
    %31 = arith.index_cast %arg1 : i32 to index
    %c0_13 = arith.constant 0 : index
    %c0_14 = arith.constant 0 : index
    %32 = vector.load %arg5[%31, %c0_13, %c0_14] : memref<4x8x32xbf16, #tpu.memory_space<vmem>>, vector<1x8x32xbf16>
    %33 = vector.shape_cast %32 : vector<1x8x32xbf16> to vector<8x32xbf16>
    %cst_15 = arith.constant dense<0.000000e+00> : vector<8x32xf32>
    %34 = tpu.matmul %30, %33, %cst_15 {dimension_numbers = #tpu.dot_dimension_numbers<[1], [0], [0], [1], [0, 0, 1, 1], [], []>} : vector<8x8xbf16>, vector<8x32xbf16>, vector<8x32xf32> -> vector<8x32xf32>
    %c0_i32_16 = arith.constant 0 : i32
    %35 = arith.cmpi eq, %arg1, %c0_i32_16 : i32
    %36 = arith.extui %35 : i1 to i32
    %c0_i32_17 = arith.constant 0 : i32
    %37 = arith.cmpi ne, %36, %c0_i32_17 : i32
    scf.if %37 {
      %c0_20 = arith.constant 0 : index
      %c0_21 = arith.constant 0 : index
      %41 = vector.load %arg6[%c0_20, %c0_21] : memref<1x32xf32, #tpu.memory_space<vmem>>, vector<1x32xf32>
      %42 = vector.broadcast %41 : vector<1x32xf32> to vector<8x32xf32>
      %43 = arith.addf %34, %42 : vector<8x32xf32>
      %c0_22 = arith.constant 0 : index
      %c0_23 = arith.constant 0 : index
      %c0_24 = arith.constant 0 : index
      %44 = vector.load %arg7[%c0_22, %c0_23, %c0_24] : memref<1x8x32xf32, #tpu.memory_space<vmem>>, vector<1x8x32xf32>
      %45 = vector.shape_cast %44 : vector<1x8x32xf32> to vector<8x32xf32>
      %46 = vector.shape_cast %43 : vector<8x32xf32> to vector<1x8x32xf32>
      tpu.vector_store %arg7[%c0_22, %c0_23, %c0_24], %46 {strides = array<i32>} : memref<1x8x32xf32, #tpu.memory_space<vmem>>, vector<1x8x32xf32>,
    } else {
    }
    %c0_i32_18 = arith.constant 0 : i32
    %38 = arith.cmpi ne, %arg1, %c0_i32_18 : i32
    %39 = arith.extui %38 : i1 to i32
    %c0_i32_19 = arith.constant 0 : i32
    %40 = arith.cmpi ne, %39, %c0_i32_19 : i32
    scf.if %40 {
      %c0_20 = arith.constant 0 : index
      %c0_21 = arith.constant 0 : index
      %c0_22 = arith.constant 0 : index
      %41 = vector.load %arg7[%c0_20, %c0_21, %c0_22] : memref<1x8x32xf32, #tpu.memory_space<vmem>>, vector<1x8x32xf32>
      %42 = vector.shape_cast %41 : vector<1x8x32xf32> to vector<8x32xf32>
      %43 = arith.addf %42, %34 : vector<8x32xf32>
      %c0_23 = arith.constant 0 : index
      %c0_24 = arith.constant 0 : index
      %c0_25 = arith.constant 0 : index
      %44 = vector.load %arg7[%c0_23, %c0_24, %c0_25] : memref<1x8x32xf32, #tpu.memory_space<vmem>>, vector<1x8x32xf32>
      %45 = vector.shape_cast %44 : vector<1x8x32xf32> to vector<8x32xf32>
      %46 = vector.shape_cast %43 : vector<8x32xf32> to vector<1x8x32xf32>
      tpu.vector_store %arg7[%c0_23, %c0_24, %c0_25], %46 {strides = array<i32>} : memref<1x8x32xf32, #tpu.memory_space<vmem>>, vector<1x8x32xf32>,
    } else {
    }
    return
  }
  func.func @transform_0(%arg0: i32, %arg1: i32) -> (i32, i32, i32) {
    %c0_i32 = arith.constant 0 : i32
    %c0_i32_0 = arith.constant 0 : i32
    %c0_i32_1 = arith.constant 0 : i32
    return %arg0, %c0_i32, %c0_i32_0 : i32, i32, i32
  }
  func.func @transform_1(%arg0: i32, %arg1: i32) -> (i32, i32) {
    %c0_i32 = arith.constant 0 : i32
    %c0_i32_0 = arith.constant 0 : i32
    %c0_i32_1 = arith.constant 0 : i32
    return %c0_i32, %c0_i32_0 : i32, i32
  }
  func.func @transform_2(%arg0: i32, %arg1: i32) -> (i32, i32) {
    %c0_i32 = arith.constant 0 : i32
    %c0_i32_0 = arith.constant 0 : i32
    %c0_i32_1 = arith.constant 0 : i32
    return %c0_i32, %c0_i32_0 : i32, i32
  }
  func.func @transform_3(%arg0: i32, %arg1: i32) -> (i32, i32, i32) {
    %c0_i32 = arith.constant 0 : i32
    %c0_i32_0 = arith.constant 0 : i32
    %c0_i32_1 = arith.constant 0 : i32
    %c0_i32_2 = arith.constant 0 : i32
    return %c0_i32, %c0_i32_0, %c0_i32_1 : i32, i32, i32
  }
  func.func @transform_4(%arg0: i32, %arg1: i32) -> (i32, i32) {
    %c0_i32 = arith.constant 0 : i32
    %c0_i32_0 = arith.constant 0 : i32
    %c0_i32_1 = arith.constant 0 : i32
    return %c0_i32, %c0_i32_0 : i32, i32
  }
  func.func @transform_5(%arg0: i32, %arg1: i32) -> (i32, i32, i32) {
    %c0_i32 = arith.constant 0 : i32
    %c0_i32_0 = arith.constant 0 : i32
    %c0_i32_1 = arith.constant 0 : i32
    return %arg0, %c0_i32, %c0_i32_0 : i32, i32, i32
  }
  func.func @transform_6(%arg0: i32, %arg1: i32) -> (i32, i32, i32, i32) {
    %c0_i32 = arith.constant 0 : i32
    %c0_i32_0 = arith.constant 0 : i32
    %c0_i32_1 = arith.constant 0 : i32
    return %arg0, %arg1, %c0_i32, %c0_i32_0 : i32, i32, i32, i32
  }
}

</mosaic_0001>

<llo_original>
// kernel: tpu_custom_call.1
$region0: #{tpu_custom_call.1}
  #allocation0 [shape = 'u32[]', space=smem, size = 0x4, offset = 0x4, fixed_abs, tag = 'smem constant byte address 0x4 - core index']
  #allocation1 [shape = 'u32[144,128]{1,0:T(1,128)}', space=vmem, size = 0x12000, scoped, tag = 'internal scratch']
  #allocation2 [shape = 'bf16[12,8,8]{2,1,0:T(8,128)(2,1)}', space=vmem, size = 0x6000, scoped, tag = 'scratch operand']
  %s0 = inlined_call_operand.hbm [shape: bf16[2,8,32], index: 0, kind: input, shape index: {}]
  %s1 = inlined_call_operand.hbm [shape: bf16[32,96], index: 1, kind: input, shape index: {}]
  %s2 = inlined_call_operand.vmem [shape: f32[1,96], index: 2, kind: input, shape index: {}]
  %s3 = inlined_call_operand.hbm [shape: bf16[4,8,32], index: 3, kind: input, shape index: {}]
  %s4 = inlined_call_operand.vmem [shape: f32[1,32], index: 4, kind: input, shape index: {}]
  %s5 = inlined_call_operand.hbm [shape: f32[2,8,32], index: 5, kind: output, shape index: {0}]
  %s6 = inlined_call_operand.hbm [shape: bf16[2,4,8,8], index: 6, kind: output, shape index: {1}]
  %7 = xla_tuple %s5, %s6
  %s8 = sld [smem:[#allocation0]]
  $region85: #{tpu_custom_call.1} parent=0
    _
  %s10 = ssub.s32 1, %s8
  %s11 = scalar_select 0, %s10, %s8
  $region1: #{tpu_custom_call.1} parent=0
    #allocation3 [shape = 'u8[4096]{0}', space=vmem, size = 0x1000, scoped, tag = 'input window, operand 0']
    #allocation4 [shape = 's32[2]{0}', space=sflag, size = 0x8, scoped, tag = 'scoped memory for tpu_custom_call.1']
    #allocation5 [shape = 's32[2]{0}', space=sflag, size = 0x8, scoped, tag = 'scoped memory for tpu_custom_call.1']
    #allocation6 [shape = 'u8[8192]{0}', space=vmem, size = 0x2000, scoped, tag = 'input window, operand 1, single buffered']
    #allocation7 [shape = 's32[1]{0}', space=sflag, size = 0x4, scoped, tag = 'scoped memory for tpu_custom_call.1']
    #allocation8 [shape = 'u8[8192]{0}', space=vmem, size = 0x2000, scoped, tag = 'input window, operand 3, single buffered']
    #allocation9 [shape = 'u8[8192]{0}', space=vmem, size = 0x2000, scoped, tag = 'output window, operand 0']
    #allocation10 [shape = 'u8[4096]{0}', space=vmem, size = 0x1000, scoped, tag = 'output window, operand 1']
    #allocation11 [shape = 's32[2]{0}', space=sflag, size = 0x8, scoped, tag = 'scoped memory for tpu_custom_call.1']
    %12 = vsyncpa [#allocation4], 0
    %s13 = scalar_lea.sflag [#allocation4], 1
    %14 = vsyncpa %s13, 0
    %15 = vsyncpa [#allocation7], 0
    %16 = vsyncpa [#allocation5], 0
    %s17 = scalar_lea.sflag [#allocation5], 1
    %18 = vsyncpa %s17, 0
    %19 = vsyncpa [#allocation11], 0
    %s20 = scalar_lea.sflag [#allocation11], 1
    %21 = vsyncpa %s20, 0
    loop: start=0, step=1, limit=10
    $region2: #{tpu_custom_call.1} parent=1 // loop_pre_header
      _
    $region3: #{tpu_custom_call.1} parent=1 // loop_header
      %s23 = sphi 0, %s27
      %p24 = scmp.ge.s32.totalorder %s23, 10
      %s30 = sphi 0, %s42
      %s31 = sphi 0, %s38
      %s32 = sphi 0, %s30
      %s33 = sphi 0, %s31
      %s34 = sphi 0, %s32
      %s35 = sphi 0, %s33
      %s45 = sphi 0, %s47
      %s48 = sphi 0, %s45
      %s49 = sphi 0, %s48
      %s65 = sphi 0, %s49
      %s69 = sphi 0, %s69
      %s71 = sphi 0, %s69
      %s72 = sphi 0, %s71
      %s86 = sphi 0, %s72
      %s90 = sphi 0, %s90
      %s92 = sphi 0, %s90
      %s93 = sphi 0, %s92
      %s107 = sphi 0, %s93
      %s111 = sphi 0, %s111
      %s113 = sphi 0, %s111
      %s114 = sphi 0, %s113
      %s128 = sphi 0, %s114
      %s132 = sphi 0, %s132
      %s134 = sphi 0, %s132
      %s135 = sphi 0, %s134
      %s149 = sphi 0, %s135
      %s155 = sphi 0, %s157
      %s158 = sphi 0, %s155
      %s159 = sphi 0, %s158
      %s175 = sphi 0, %s159
      %s183 = sphi 0, %s185
      %s186 = sphi 0, %s183
      %s187 = sphi 0, %s186
      %s203 = sphi 0, %s187
    $region4: #{tpu_custom_call.1} parent=1 // loop_header_branch
      %26 = sbr.rel (%p24) target = $region8
    $region5: #{tpu_custom_call.1} parent=1 // loop_body
      %s28 = ssub.s32 %s23, 1
      %s29 = ssub.s32 %s23, 2
      %s36 = sadd.s32 1, %s31
      %p37 = scmp.ge.s32.totalorder %s36, 4
      %s38 = scalar_select %p37, 0, %s36
      %s39 = sadd.s32 1, %s30
      %s40 = scalar_select %p37, %s39, %s30
      %p41 = scmp.ge.s32.totalorder %s40, 2
      %s42 = scalar_select %p41, 0, %s40
      %s43 = ssub.s32 %s30, %s42
      %p44 = scmp.eq.s32.totalorder %s43, 0
      %s46 = sadd.s32 %s45, 1
      %s47 = scalar_select %p44, %s45, %s46
      %p50 = pneg %p44
      %p51 = scmp.eq.s32.totalorder %s23, 7
      %p52 = por %p50, %p51
      %p53 = scmp.ne.s32.totalorder %s45, %s48
      %p54 = scmp.eq.s32.totalorder %s23, 0
      %p55 = por %p53, %p54
      %p56 = scmp.ne.s32.totalorder %s45, %s48
      %p57 = scmp.eq.s32.totalorder %s28, 7
      %p58 = por %p56, %p57
      %p59 = scmp.ne.s32.totalorder %s48, %s49
      %p60 = scmp.eq.s32.totalorder %s28, 0
      %p61 = por %p59, %p60
      %p62 = scmp.ne.s32.totalorder %s48, %s49
      %p63 = scmp.eq.s32.totalorder %s29, 7
      %p64 = por %p62, %p63
      %p66 = scmp.ne.s32.totalorder %s49, %s65
      %p67 = scmp.eq.s32.totalorder %s29, 0
      %p68 = por %p66, %p67
      %s70 = sadd.s32 %s69, 1
      %p73 = scmp.eq.s32.totalorder %s23, 7
      %p74 = scmp.ne.s32.totalorder %s69, %s71
      %p75 = scmp.eq.s32.totalorder %s23, 0
      %p76 = por %p74, %p75
      %p77 = scmp.ne.s32.totalorder %s69, %s71
      %p78 = scmp.eq.s32.totalorder %s28, 7
      %p79 = por %p77, %p78
      %p80 = scmp.ne.s32.totalorder %s71, %s72
      %p81 = scmp.eq.s32.totalorder %s28, 0
      %p82 = por %p80, %p81
      %p83 = scmp.ne.s32.totalorder %s71, %s72
      %p84 = scmp.eq.s32.totalorder %s29, 7
      %p85 = por %p83, %p84
      %p87 = scmp.ne.s32.totalorder %s72, %s86
      %p88 = scmp.eq.s32.totalorder %s29, 0
      %p89 = por %p87, %p88
      %s91 = sadd.s32 %s90, 1
      %p94 = scmp.eq.s32.totalorder %s23, 7
      %p95 = scmp.ne.s32.totalorder %s90, %s92
      %p96 = scmp.eq.s32.totalorder %s23, 0
      %p97 = por %p95, %p96
      %p98 = scmp.ne.s32.totalorder %s90, %s92
      %p99 = scmp.eq.s32.totalorder %s28, 7
      %p100 = por %p98, %p99
      %p101 = scmp.ne.s32.totalorder %s92, %s93
      %p102 = scmp.eq.s32.totalorder %s28, 0
      %p103 = por %p101, %p102
      %p104 = scmp.ne.s32.totalorder %s92, %s93
      %p105 = scmp.eq.s32.totalorder %s29, 7
      %p106 = por %p104, %p105
      %p108 = scmp.ne.s32.totalorder %s93, %s107
      %p109 = scmp.eq.s32.totalorder %s29, 0
      %p110 = por %p108, %p109
      %s112 = sadd.s32 %s111, 1
      %p115 = scmp.eq.s32.totalorder %s23, 7
      %p116 = scmp.ne.s32.totalorder %s111, %s113
      %p117 = scmp.eq.s32.totalorder %s23, 0
      %p118 = por %p116, %p117
      %p119 = scmp.ne.s32.totalorder %s111, %s113
      %p120 = scmp.eq.s32.totalorder %s28, 7
      %p121 = por %p119, %p120
      %p122 = scmp.ne.s32.totalorder %s113, %s114
      %p123 = scmp.eq.s32.totalorder %s28, 0
      %p124 = por %p122, %p123
      %p125 = scmp.ne.s32.totalorder %s113, %s114
      %p126 = scmp.eq.s32.totalorder %s29, 7
      %p127 = por %p125, %p126
      %p129 = scmp.ne.s32.totalorder %s114, %s128
      %p130 = scmp.eq.s32.totalorder %s29, 0
      %p131 = por %p129, %p130
      %s133 = sadd.s32 %s132, 1
      %p136 = scmp.eq.s32.totalorder %s23, 7
      %p137 = scmp.ne.s32.totalorder %s132, %s134
      %p138 = scmp.eq.s32.totalorder %s23, 0
      %p139 = por %p137, %p138
      %p140 = scmp.ne.s32.totalorder %s132, %s134
      %p141 = scmp.eq.s32.totalorder %s28, 7
      %p142 = por %p140, %p141
      %p143 = scmp.ne.s32.totalorder %s134, %s135
      %p144 = scmp.eq.s32.totalorder %s28, 0
      %p145 = por %p143, %p144
      %p146 = scmp.ne.s32.totalorder %s134, %s135
      %p147 = scmp.eq.s32.totalorder %s29, 7
      %p148 = por %p146, %p147
      %p150 = scmp.ne.s32.totalorder %s135, %s149
      %p151 = scmp.eq.s32.totalorder %s29, 0
      %p152 = por %p150, %p151
      %s153 = ssub.s32 %s30, %s42
      %p154 = scmp.eq.s32.totalorder %s153, 0
      %s156 = sadd.s32 %s155, 1
      %s157 = scalar_select %p154, %s155, %s156
      %p160 = pneg %p154
      %p161 = scmp.eq.s32.totalorder %s23, 7
      %p162 = por %p160, %p161
      %p163 = scmp.ne.s32.totalorder %s155, %s158
      %p164 = scmp.eq.s32.totalorder %s23, 0
      %p165 = por %p163, %p164
      %p166 = scmp.ne.s32.totalorder %s155, %s158
      %p167 = scmp.eq.s32.totalorder %s28, 7
      %p168 = por %p166, %p167
      %p169 = scmp.ne.s32.totalorder %s158, %s159
      %p170 = scmp.eq.s32.totalorder %s28, 0
      %p171 = por %p169, %p170
      %p172 = scmp.ne.s32.totalorder %s158, %s159
      %p173 = scmp.eq.s32.totalorder %s29, 7
      %p174 = por %p172, %p173
      %p176 = scmp.ne.s32.totalorder %s159, %s175
      %p177 = scmp.eq.s32.totalorder %s29, 0
      %p178 = por %p176, %p177
      %s179 = ssub.s32 %s30, %s42
      %s180 = ssub.s32 %s31, %s38
      %s181 = sor.u32 %s179, %s180
      %p182 = scmp.eq.s32.totalorder %s181, 0
      %s184 = sadd.s32 %s183, 1
      %s185 = scalar_select %p182, %s183, %s184
      %p188 = pneg %p182
      %p189 = scmp.eq.s32.totalorder %s23, 7
      %p190 = por %p188, %p189
      %p191 = scmp.ne.s32.totalorder %s183, %s186
      %p192 = scmp.eq.s32.totalorder %s23, 0
      %p193 = por %p191, %p192
      %p194 = scmp.ne.s32.totalorder %s183, %s186
      %p195 = scmp.eq.s32.totalorder %s28, 7
      %p196 = por %p194, %p195
      %p197 = scmp.ne.s32.totalorder %s186, %s187
      %p198 = scmp.eq.s32.totalorder %s28, 0
      %p199 = por %p197, %p198
      %p200 = scmp.ne.s32.totalorder %s186, %s187
      %p201 = scmp.eq.s32.totalorder %s29, 7
      %p202 = por %p200, %p201
      %p204 = scmp.ne.s32.totalorder %s187, %s203
      %p205 = scmp.eq.s32.totalorder %s29, 0
      %p206 = por %p204, %p205
      %p207 = scmp.le.s32.totalorder 1, %s23
      %p208 = scmp.lt.s32.totalorder %s23, 9
      %p209 = pnand %p207, %p208
      %p210 = pneg %p209
      // Predicated region
      $region9: #{tpu_custom_call.1} parent=5 // pred_check
        _
      $region10: #{tpu_custom_call.1} parent=5 // pred_check_branch
        %212 = sbr.rel (%p209) target = $region12
      $region11: #{tpu_custom_call.1} parent=5 // pred_region
        %s213 = ssub.s32 %s23, 1
        // Predicated region
        $region13: #{tpu_custom_call.1} parent=11 // pred_check
          %p214 = pneg %p82
        $region14: #{tpu_custom_call.1} parent=11 // pred_check_branch
          %216 = sbr.rel (%p214) target = $region16
        $region15: #{tpu_custom_call.1} parent=11 // pred_region
          %s218 = ssub.s32 256, 256
          %219 = vsyncadd [#allocation7], %s218
          %s220 = sshll.u32 [#allocation6], 4
          %s221 = int_to_ptr.vmem [resolvable:$true] %s220
          %226 = dma.hbm_to_vmem [thread:$0]  %s1, 256, %s221, [#allocation7], 64, 64, 4
        $region16: #{tpu_custom_call.1} parent=11 // pred_fallthru
          _
        // Predicated region
        $region17: #{tpu_custom_call.1} parent=11 // pred_check
          %p227 = pneg %p103
        $region18: #{tpu_custom_call.1} parent=11 // pred_check_branch
          %229 = sbr.rel (%p227) target = $region20
        $region19: #{tpu_custom_call.1} parent=11 // pred_region
          _
        $region20: #{tpu_custom_call.1} parent=11 // pred_fallthru
          _
        // Predicated region
        $region21: #{tpu_custom_call.1} parent=11 // pred_check
          %p230 = pneg %p124
        $region22: #{tpu_custom_call.1} parent=11 // pred_check_branch
          %232 = sbr.rel (%p230) target = $region24
        $region23: #{tpu_custom_call.1} parent=11 // pred_region
          %s234 = ssub.s32 256, 256
          %235 = vsyncadd [#allocation7], %s234
          %s236 = sshll.u32 [#allocation8], 4
          %s237 = int_to_ptr.vmem [resolvable:$true] %s236
          %242 = dma.hbm_to_vmem [thread:$0]  %s3, 256, %s237, [#allocation7], 64, 64, 4
        $region24: #{tpu_custom_call.1} parent=11 // pred_fallthru
          _
        // Predicated region
        $region25: #{tpu_custom_call.1} parent=11 // pred_check
          %p243 = pneg %p145
        $region26: #{tpu_custom_call.1} parent=11 // pred_check_branch
          %245 = sbr.rel (%p243) target = $region28
        $region27: #{tpu_custom_call.1} parent=11 // pred_region
          _
        $region28: #{tpu_custom_call.1} parent=11 // pred_fallthru
          _
      $region12: #{tpu_custom_call.1} parent=5 // pred_fallthru
        _
      %p246 = scmp.lt.s32.totalorder %s23, 8
      // Predicated region
      $region29: #{tpu_custom_call.1} parent=5 // pred_check
        %p247 = pneg %p246
      $region30: #{tpu_custom_call.1} parent=5 // pred_check_branch
        %249 = sbr.rel (%p247) target = $region32
      $region31: #{tpu_custom_call.1} parent=5 // pred_region
        // Predicated region
        $region33: #{tpu_custom_call.1} parent=31 // pred_check
          %p250 = pneg %p55
        $region34: #{tpu_custom_call.1} parent=31 // pred_check_branch
          %252 = sbr.rel (%p250) target = $region36
        $region35: #{tpu_custom_call.1} parent=31 // pred_region
          %s253 = sand.u32 %s45, 1
          %s254 = scalar_lea.sflag [#allocation4], %s253
          %s255 = sand.u32 %s45, 1
          %s256 = smul.addr %s255, 4
          %s257 = scalar_lea.vmem [#allocation3], %s256
          %s259 = ssub.s32 64, 64
          %260 = vsyncadd %s254, %s259
          %s261 = smul.addr %s30, 64
          %s262 = scalar_lea.hbm %s0, %s261
          %s264 = sshll.u32 %s257, 4
          %s265 = int_to_ptr.vmem [resolvable:$true] %s264
          %267 = dma.hbm_to_vmem [thread:$0]  %s262, 64, %s265, %s254
        $region36: #{tpu_custom_call.1} parent=31 // pred_fallthru
          _
      $region32: #{tpu_custom_call.1} parent=5 // pred_fallthru
        _
      %p268 = scmp.le.s32.totalorder 1, %s23
      %p269 = scmp.lt.s32.totalorder %s23, 9
      %p270 = pnand %p268, %p269
      %p271 = pneg %p270
      // Predicated region
      $region37: #{tpu_custom_call.1} parent=5 // pred_check
        _
      $region38: #{tpu_custom_call.1} parent=5 // pred_check_branch
        %273 = sbr.rel (%p270) target = $region40
      $region39: #{tpu_custom_call.1} parent=5 // pred_region
        %s274 = ssub.s32 %s23, 1
        %s275 = sand.u32 %s48, 1
        %s276 = scalar_lea.sflag [#allocation4], %s275
        %s277 = sand.u32 %s48, 1
        %s278 = smul.addr %s277, 4
        %s279 = scalar_lea.vmem [#allocation3], %s278
        // Predicated region
        $region41: #{tpu_custom_call.1} parent=39 // pred_check
          %p280 = pneg %p61
        $region42: #{tpu_custom_call.1} parent=39 // pred_check_branch
          %282 = sbr.rel (%p280) target = $region44
        $region43: #{tpu_custom_call.1} parent=39 // pred_region
          %283 = dma.done %s276, 64
        $region44: #{tpu_custom_call.1} parent=39 // pred_fallthru
          _
        // Predicated region
        $region45: #{tpu_custom_call.1} parent=39 // pred_check
          %p284 = pneg %p82
        $region46: #{tpu_custom_call.1} parent=39 // pred_check_branch
          %286 = sbr.rel (%p284) target = $region48
        $region47: #{tpu_custom_call.1} parent=39 // pred_region
          %287 = dma.done [#allocation7], 256
        $region48: #{tpu_custom_call.1} parent=39 // pred_fallthru
          _
        // Predicated region
        $region49: #{tpu_custom_call.1} parent=39 // pred_check
          %p288 = pneg %p124
        $region50: #{tpu_custom_call.1} parent=39 // pred_check_branch
          %290 = sbr.rel (%p288) target = $region52
        $region51: #{tpu_custom_call.1} parent=39 // pred_region
          %291 = dma.done [#allocation7], 256
        $region52: #{tpu_custom_call.1} parent=39 // pred_fallthru
          _
        %s292 = sand.u32 %s48, 1
        %s293 = scalar_lea.sflag [#allocation4], %s292
        %s294 = sand.u32 %s48, 1
        %s295 = smul.addr %s294, 4
        %s296 = scalar_lea.vmem [#allocation3], %s295
        %p297 = pneg %p61
        %p298 = pneg %p58
        %p299 = pneg %p82
        %p300 = pneg %p79
        %p301 = pneg %p103
        %p302 = pneg %p100
        %p303 = pneg %p124
        %p304 = pneg %p121
        %p305 = pneg %p145
        %p306 = pneg %p142
        %p307 = pneg %p171
        %p308 = pneg %p168
        %s309 = sand.u32 %s158, 1
        %s310 = scalar_lea.sflag [#allocation5], %s309
        %s311 = sand.u32 %s158, 1
        %s312 = smul.addr %s311, 8
        %s313 = scalar_lea.vmem [#allocation9], %s312
        %p314 = pneg %p199
        %p315 = pneg %p196
        %s316 = sand.u32 %s186, 1
        %s317 = scalar_lea.sflag [#allocation11], %s316
        %s318 = sand.u32 %s186, 1
        %s319 = smul.addr %s318, 4
        %s320 = scalar_lea.vmem [#allocation10], %s319
        %p322 = scmp.eq.s32.totalorder %s33, 0
        // Predicated region
        $region53: #{tpu_custom_call.1} parent=39 // pred_check
          %p323 = pneg %p322
        $region54: #{tpu_custom_call.1} parent=39 // pred_check_branch
          %325 = sbr.rel (%p323) target = $region56
        $region55: #{tpu_custom_call.1} parent=39 // pred_region
          %v326 = vld [vmem:[%s279] sm:$0xf]
          %v327 = vld [vmem:[#allocation6] sm:$0xf]
          %v328 = vld [vmem:[#allocation6 + $0x4] sm:$0xf]
          %v329 = vld [vmem:[#allocation6 + $0x8] sm:$0xf]
          %v330 = vld [vmem:[#allocation6 + $0xc] sm:$0xf]
          %v331 = vld [vmem:[%s2] sm:$0x1]
          %v333 = vlaneseq
          %v334 = vshrl.u32 %v333, 7
          %v335 = vsub.s32 0, %v334
          %v336 = vrot.slane %v331, %v335
          %v342 = vunpack.c.l.b16 %v327
          %v343 = vunpack.c.l.b16 %v328
          %v344 = vunpack.c.l.b16 %v329
          %v345 = vunpack.c.l.b16 %v330
          %v346 = vpack.c.b16 %v343, %v342
          %v347 = vpack.c.b16 %v345, %v344
          %vm350 = vcmask 261120
          %v352 = vsel %vm350, %v326, 0
          %354 = vmatprep.subr.bf16.mxu0 0
          %355 = vmatpush1.bf16.msra.mxu0 %v346
          %356 = vmatprep.subr.bf16.mxu0 0
          %357 = vmatpush1.bf16.msra.mxu0 %v347
          %358 = vmatprep.subr.bf16.mxu0 0
          %359 = vmatpush1.bf16.msra.mxu0 0
          %360 = vmatprep.subr.bf16.mxu0 0
          %361 = vmatpush1.bf16.msra.mxu0 0
          %362 = vmatprep.subr.bf16.mxu0 0
          %363 = vmatpush1.bf16.msra.mxu0 0
          %364 = vmatprep.subr.bf16.mxu0 0
          %365 = vmatpush1.bf16.msra.mxu0 0
          %366 = vmatprep.subr.bf16.mxu0 0
          %367 = vmatpush1.bf16.msra.mxu0 0
          %368 = vmatprep.subr.bf16.mxu0 0
          %369 = vmatpush1.bf16.msra.mxu0 0
          %370 = vmatprep.subr.bf16.mxu0 0
          %371 = vmatpush1.bf16.msra.mxu0 0
          %372 = vmatprep.subr.bf16.mxu0 0
          %373 = vmatpush1.bf16.msra.mxu0 0
          %374 = vmatprep.subr.bf16.mxu0 0
          %375 = vmatpush1.bf16.msra.mxu0 0
          %376 = vmatprep.subr.bf16.mxu0 0
          %377 = vmatpush1.bf16.msra.mxu0 0
          %378 = vmatprep.subr.bf16.mxu0 0
          %379 = vmatpush1.bf16.msra.mxu0 0
          %380 = vmatprep.subr.bf16.mxu0 0
          %381 = vmatpush1.bf16.msra.mxu0 0
          %382 = vmatprep.subr.bf16.mxu0 0
          %383 = vmatpush1.bf16.msra.mxu0 0
          %384 = vmatprep.subr.bf16.mxu0 0
          %385 = vmatpush1.bf16.msra.mxu0 0
          %386 = vmatprep.mubr.bf16.mxu0 0
          %387 = vmatmul.mubr.bf16.gmra.mrb[0].mxu0 %v352
          %v388 = vpop.f32.mrb[0].mxu0
          %v389 = vadd.f32 %v336, %v388
          %v390 = vpop.f32.mrb[0].mxu0
          %v391 = vpop.f32.mrb[0].mxu0
          %v392 = vpop.f32.mrb[0].mxu0
          %393 = vdwg.mxu0
          %v394 = vpack.c.bf16 %v389, %v389
          %vm395 = vcmask 60416
          %396 = vst.msk [vmem:[#allocation2] sm:$0xf] %vm395, %v394
          %v398 = vunpack.c.l.b16 %v394
          %v399 = vpack.c.b16 %v398, %v398
          %400 = vrot.lane.b32.xlu0 %v399, 120
          %v401 = vpop.permute.xlu0 %400
          %s403 = scalar_lea.vmem [#allocation2], 4
          %404 = vst.msk [vmem:[%s403] sm:$0xf] %vm395, %v401
          %405 = vrot.lane.b32.xlu0 %v399, 112
          %v406 = vpop.permute.xlu0 %405
          %s408 = scalar_lea.vmem [#allocation2], 8
          %409 = vst.msk [vmem:[%s408] sm:$0xf] %vm395, %v406
          %410 = vrot.lane.b32.xlu0 %v399, 104
          %v411 = vpop.permute.xlu0 %410
          %s413 = scalar_lea.vmem [#allocation2], 12
          %414 = vst.msk [vmem:[%s413] sm:$0xf] %vm395, %v411
          %415 = vrot.lane.b32.xlu0 %v399, 96
          %v416 = vpop.permute.xlu0 %415
          %s418 = scalar_lea.vmem [#allocation2], 16
          %419 = vst.msk [vmem:[%s418] sm:$0xf] %vm395, %v416
          %420 = vrot.lane.b32.xlu0 %v399, 88
          %v421 = vpop.permute.xlu0 %420
          %s423 = scalar_lea.vmem [#allocation2], 20
          %424 = vst.msk [vmem:[%s423] sm:$0xf] %vm395, %v421
          %425 = vrot.lane.b32.xlu0 %v399, 80
          %v426 = vpop.permute.xlu0 %425
          %s428 = scalar_lea.vmem [#allocation2], 24
          %429 = vst.msk [vmem:[%s428] sm:$0xf] %vm395, %v426
          %430 = vrot.lane.b32.xlu0 %v399, 72
          %v431 = vpop.permute.xlu0 %430
          %s433 = scalar_lea.vmem [#allocation2], 28
          %434 = vst.msk [vmem:[%s433] sm:$0xf] %vm395, %v431
          %435 = vrot.lane.b32.xlu0 %v399, 64
          %v436 = vpop.permute.xlu0 %435
          %s438 = scalar_lea.vmem [#allocation2], 32
          %439 = vst.msk [vmem:[%s438] sm:$0xf] %vm395, %v436
          %440 = vrot.lane.b32.xlu0 %v399, 56
          %v441 = vpop.permute.xlu0 %440
          %s443 = scalar_lea.vmem [#allocation2], 36
          %444 = vst.msk [vmem:[%s443] sm:$0xf] %vm395, %v441
          %445 = vrot.lane.b32.xlu0 %v399, 48
          %v446 = vpop.permute.xlu0 %445
          %s448 = scalar_lea.vmem [#allocation2], 40
          %449 = vst.msk [vmem:[%s448] sm:$0xf] %vm395, %v446
          %450 = vrot.lane.b32.xlu0 %v399, 40
          %v451 = vpop.permute.xlu0 %450
          %s453 = scalar_lea.vmem [#allocation2], 44
          %454 = vst.msk [vmem:[%s453] sm:$0xf] %vm395, %v451
        $region56: #{tpu_custom_call.1} parent=39 // pred_fallthru
          _
        %s455 = smul.addr %s33, 4
        %s456 = scalar_lea.vmem [#allocation2], %s455
        %v457 = vld [vmem:[%s456] sm:$0xf]
        %s458 = sadd.s32 %s33, 4
        %s459 = smul.addr %s458, 4
        %s460 = scalar_lea.vmem [#allocation2], %s459
        %v461 = vld [vmem:[%s460] sm:$0xf]
        %s462 = sadd.s32 %s33, 8
        %s463 = smul.addr %s462, 4
        %s464 = scalar_lea.vmem [#allocation2], %s463
        %v465 = vld [vmem:[%s464] sm:$0xf]
        %vm466 = vcmask 64512
        %v468 = vsel %vm466, %v457, 0
        %v471 = vsel %vm466, %v461, 0
        %473 = vmatprep.subr.bf16.mxu0 0
        %474 = vmatpush1.bf16.xpose.msra.mxu0 %v471
        %475 = vmatprep.subr.bf16.mxu0 0
        %476 = vmatpush1.bf16.xpose.msra.mxu0 0
        %477 = vmatprep.subr.bf16.mxu0 0
        %478 = vmatpush1.bf16.xpose.msra.mxu0 0
        %479 = vmatprep.subr.bf16.mxu0 0
        %480 = vmatpush1.bf16.xpose.msra.mxu0 0
        %481 = vmatprep.subr.bf16.mxu0 0
        %482 = vmatpush1.bf16.xpose.msra.mxu0 0
        %483 = vmatprep.subr.bf16.mxu0 0
        %484 = vmatpush1.bf16.xpose.msra.mxu0 0
        %485 = vmatprep.subr.bf16.mxu0 0
        %486 = vmatpush1.bf16.xpose.msra.mxu0 0
        %487 = vmatprep.subr.bf16.mxu0 0
        %488 = vmatpush1.bf16.xpose.msra.mxu0 0
        %489 = vmatprep.subr.bf16.mxu0 0
        %490 = vmatpush1.bf16.xpose.msra.mxu0 0
        %491 = vmatprep.subr.bf16.mxu0 0
        %492 = vmatpush1.bf16.xpose.msra.mxu0 0
        %493 = vmatprep.subr.bf16.mxu0 0
        %494 = vmatpush1.bf16.xpose.msra.mxu0 0
        %495 = vmatprep.subr.bf16.mxu0 0
        %496 = vmatpush1.bf16.xpose.msra.mxu0 0
        %497 = vmatprep.subr.bf16.mxu0 0
        %498 = vmatpush1.bf16.xpose.msra.mxu0 0
        %499 = vmatprep.subr.bf16.mxu0 0
        %500 = vmatpush1.bf16.xpose.msra.mxu0 0
        %501 = vmatprep.subr.bf16.mxu0 0
        %502 = vmatpush1.bf16.xpose.msra.mxu0 0
        %503 = vmatprep.subr.bf16.mxu0 0
        %504 = vmatpush1.bf16.xpose.msra.mxu0 0
        %505 = vmatprep.mubr.bf16.mxu0 0
        %506 = vmatmul.mubr.bf16.gmra.mrb[0].mxu0 %v468
        %v507 = vpop.f32.mrb[0].mxu0
        %v508 = vadd.f32 0.0, %v507
        %v509 = vpop.f32.mrb[0].mxu0
        %v510 = vpop.f32.mrb[0].mxu0
        %v511 = vpop.f32.mrb[0].mxu0
        %512 = vdwg.mxu0
        %v513 = vsel %vm466, %v508, -inf
        %514 = vmax.xlane.f32.xlu0 %v513
        %v515 = vpop.xlane.xlu0 %514
        %v516 = vsub.f32 %v508, %v515
        %v517 = vmul.f32 %v516, 1.442695
        %v518 = vpow.pop %v517
        %v519 = vsel %vm466, %v518, 0.0
        %520 = vadd.xlane.f32.xlu0 %v519
        %v521 = vpop.xlane.xlu0 %520
        %v522 = vrcp.pop %v521
        %v523 = vmul.f32 %v518, %v522
        %v524 = vpack.c.bf16 %v523, %v523
        %vm525 = vcmask 60416
        %526 = vst.msk [vmem:[%s320] sm:$0xf] %vm525, %v524
        %v528 = vsel %vm466, %v524, 0
        %vm530 = vcmask 1043456
        %v532 = vsel %vm530, %v465, 0
        %534 = vmatprep.subr.bf16.mxu0 0
        %535 = vmatpush1.bf16.msra.mxu0 %v532
        %536 = vmatprep.subr.bf16.mxu0 0
        %537 = vmatpush1.bf16.msra.mxu0 0
        %538 = vmatprep.subr.bf16.mxu0 0
        %539 = vmatpush1.bf16.msra.mxu0 0
        %540 = vmatprep.subr.bf16.mxu0 0
        %541 = vmatpush1.bf16.msra.mxu0 0
        %542 = vmatprep.subr.bf16.mxu0 0
        %543 = vmatpush1.bf16.msra.mxu0 0
        %544 = vmatprep.subr.bf16.mxu0 0
        %545 = vmatpush1.bf16.msra.mxu0 0
        %546 = vmatprep.subr.bf16.mxu0 0
        %547 = vmatpush1.bf16.msra.mxu0 0
        %548 = vmatprep.subr.bf16.mxu0 0
        %549 = vmatpush1.bf16.msra.mxu0 0
        %550 = vmatprep.subr.bf16.mxu0 0
        %551 = vmatpush1.bf16.msra.mxu0 0
        %552 = vmatprep.subr.bf16.mxu0 0
        %553 = vmatpush1.bf16.msra.mxu0 0
        %554 = vmatprep.subr.bf16.mxu0 0
        %555 = vmatpush1.bf16.msra.mxu0 0
        %556 = vmatprep.subr.bf16.mxu0 0
        %557 = vmatpush1.bf16.msra.mxu0 0
        %558 = vmatprep.subr.bf16.mxu0 0
        %559 = vmatpush1.bf16.msra.mxu0 0
        %560 = vmatprep.subr.bf16.mxu0 0
        %561 = vmatpush1.bf16.msra.mxu0 0
        %562 = vmatprep.subr.bf16.mxu0 0
        %563 = vmatpush1.bf16.msra.mxu0 0
        %564 = vmatprep.subr.bf16.mxu0 0
        %565 = vmatpush1.bf16.msra.mxu0 0
        %566 = vmatprep.mubr.bf16.mxu0 0
        %567 = vmatmul.mubr.bf16.gmra.mrb[0].mxu0 %v528
        %v568 = vpop.f32.mrb[0].mxu0
        %v569 = vadd.f32 0.0, %v568
        %v570 = vpop.f32.mrb[0].mxu0
        %v571 = vpop.f32.mrb[0].mxu0
        %v572 = vpop.f32.mrb[0].mxu0
        %573 = vdwg.mxu0
        %v574 = vpack.c.bf16 %v569, %v569
        %s575 = smul.addr %s33, 4
        %s576 = scalar_lea.vmem [#allocation8], %s575
        %v577 = vld [vmem:[%s576] sm:$0xf]
        %v579 = vsel %vm466, %v574, 0
        %v582 = vsel %vm530, %v577, 0
        %584 = vmatprep.subr.bf16.mxu0 0
        %585 = vmatpush1.bf16.msra.mxu0 %v582
        %586 = vmatprep.subr.bf16.mxu0 0
        %587 = vmatpush1.bf16.msra.mxu0 0
        %588 = vmatprep.subr.bf16.mxu0 0
        %589 = vmatpush1.bf16.msra.mxu0 0
        %590 = vmatprep.subr.bf16.mxu0 0
        %591 = vmatpush1.bf16.msra.mxu0 0
        %592 = vmatprep.subr.bf16.mxu0 0
        %593 = vmatpush1.bf16.msra.mxu0 0
        %594 = vmatprep.subr.bf16.mxu0 0
        %595 = vmatpush1.bf16.msra.mxu0 0
        %596 = vmatprep.subr.bf16.mxu0 0
        %597 = vmatpush1.bf16.msra.mxu0 0
        %598 = vmatprep.subr.bf16.mxu0 0
        %599 = vmatpush1.bf16.msra.mxu0 0
        %600 = vmatprep.subr.bf16.mxu0 0
        %601 = vmatpush1.bf16.msra.mxu0 0
        %602 = vmatprep.subr.bf16.mxu0 0
        %603 = vmatpush1.bf16.msra.mxu0 0
        %604 = vmatprep.subr.bf16.mxu0 0
        %605 = vmatpush1.bf16.msra.mxu0 0
        %606 = vmatprep.subr.bf16.mxu0 0
        %607 = vmatpush1.bf16.msra.mxu0 0
        %608 = vmatprep.subr.bf16.mxu0 0
        %609 = vmatpush1.bf16.msra.mxu0 0
        %610 = vmatprep.subr.bf16.mxu0 0
        %611 = vmatpush1.bf16.msra.mxu0 0
        %612 = vmatprep.subr.bf16.mxu0 0
        %613 = vmatpush1.bf16.msra.mxu0 0
        %614 = vmatprep.subr.bf16.mxu0 0
        %615 = vmatpush1.bf16.msra.mxu0 0
        %616 = vmatprep.mubr.bf16.mxu0 0
        %617 = vmatmul.mubr.bf16.gmra.mrb[0].mxu0 %v579
        %v618 = vpop.f32.mrb[0].mxu0
        %v619 = vadd.f32 0.0, %v618
        %v620 = vpop.f32.mrb[0].mxu0
        %v621 = vpop.f32.mrb[0].mxu0
        %v622 = vpop.f32.mrb[0].mxu0
        %623 = vdwg.mxu0
        // Predicated region
        $region57: #{tpu_custom_call.1} parent=39 // pred_check
          %p624 = pneg %p322
        $region58: #{tpu_custom_call.1} parent=39 // pred_check_branch
          %626 = sbr.rel (%p624) target = $region60
        $region59: #{tpu_custom_call.1} parent=39 // pred_region
          %v627 = vld [vmem:[%s4] sm:$0x1]
          %v629 = vlaneseq
          %v630 = vshrl.u32 %v629, 7
          %v631 = vsub.s32 0, %v630
          %v632 = vrot.slane %v627, %v631
          %v634 = vadd.f32 %v619, %v632
          %vm635 = vcmask 261120
          %636 = vst.msk [vmem:[%s313] sm:$0xff] %vm635, %v634
        $region60: #{tpu_custom_call.1} parent=39 // pred_fallthru
          _
        %p637 = scmp.ne.s32.totalorder %s33, 0
        // Predicated region
        $region61: #{tpu_custom_call.1} parent=39 // pred_check
          %p638 = pneg %p637
        $region62: #{tpu_custom_call.1} parent=39 // pred_check_branch
          %640 = sbr.rel (%p638) target = $region64
        $region63: #{tpu_custom_call.1} parent=39 // pred_region
          %v641 = vld [vmem:[%s313] sm:$0xff]
          %v642 = vadd.f32 %v641, %v619
          %vm643 = vcmask 261120
          %644 = vst.msk [vmem:[%s313] sm:$0xff] %vm643, %v642
        $region64: #{tpu_custom_call.1} parent=39 // pred_fallthru
          _
        %s645 = sand.u32 %s158, 1
        %s646 = scalar_lea.sflag [#allocation5], %s645
        %s647 = sand.u32 %s158, 1
        %s648 = smul.addr %s647, 8
        %s649 = scalar_lea.vmem [#allocation9], %s648
        %s650 = sand.u32 %s186, 1
        %s651 = scalar_lea.sflag [#allocation11], %s650
        %s652 = sand.u32 %s186, 1
        %s653 = smul.addr %s652, 4
        %s654 = scalar_lea.vmem [#allocation10], %s653
        // Predicated region
        $region65: #{tpu_custom_call.1} parent=39 // pred_check
          %p655 = pneg %p168
        $region66: #{tpu_custom_call.1} parent=39 // pred_check_branch
          %657 = sbr.rel (%p655) target = $region68
        $region67: #{tpu_custom_call.1} parent=39 // pred_region
          %s659 = ssub.s32 128, 128
          %660 = vsyncadd %s646, %s659
          %s661 = smul.addr %s32, 128
          %s662 = scalar_lea.hbm %s5, %s661
          %s664 = sshll.u32 %s649, 4
          %s665 = int_to_ptr.vmem [resolvable:$true] %s664
          %667 = dma.vmem_to_hbm [thread:$0]  %s665, 128, %s662, %s646
        $region68: #{tpu_custom_call.1} parent=39 // pred_fallthru
          _
        // Predicated region
        $region69: #{tpu_custom_call.1} parent=39 // pred_check
          %p668 = pneg %p196
        $region70: #{tpu_custom_call.1} parent=39 // pred_check_branch
          %670 = sbr.rel (%p668) target = $region72
        $region71: #{tpu_custom_call.1} parent=39 // pred_region
          %s672 = ssub.s32 64, 64
          %673 = vsyncadd %s651, %s672
          %s674 = smul.addr %s32, 4
          %s675 = sadd.s32 %s33, %s674
          %s676 = smul.addr %s675, 64
          %s677 = scalar_lea.hbm %s6, %s676
          %s679 = sshll.u32 %s654, 4
          %s680 = int_to_ptr.vmem [resolvable:$true] %s679
          %682 = dma.vmem_to_hbm [thread:$0]  %s680, 64, %s677, %s651
        $region72: #{tpu_custom_call.1} parent=39 // pred_fallthru
          _
      $region40: #{tpu_custom_call.1} parent=5 // pred_fallthru
        _
      %p683 = scmp.le.s32.totalorder 2, %s23
      // Predicated region
      $region73: #{tpu_custom_call.1} parent=5 // pred_check
        %p684 = pneg %p683
      $region74: #{tpu_custom_call.1} parent=5 // pred_check_branch
        %686 = sbr.rel (%p684) target = $region76
      $region75: #{tpu_custom_call.1} parent=5 // pred_region
        %s687 = ssub.s32 %s23, 2
        // Predicated region
        $region77: #{tpu_custom_call.1} parent=75 // pred_check
          %p688 = pneg %p174
        $region78: #{tpu_custom_call.1} parent=75 // pred_check_branch
          %690 = sbr.rel (%p688) target = $region80
        $region79: #{tpu_custom_call.1} parent=75 // pred_region
          %s691 = sand.u32 %s159, 1
          %s692 = scalar_lea.sflag [#allocation5], %s691
          %s693 = sand.u32 %s159, 1
          %s694 = smul.addr %s693, 8
          %s695 = scalar_lea.vmem [#allocation9], %s694
          %696 = dma.done %s692, 128
        $region80: #{tpu_custom_call.1} parent=75 // pred_fallthru
          _
        // Predicated region
        $region81: #{tpu_custom_call.1} parent=75 // pred_check
          %p697 = pneg %p202
        $region82: #{tpu_custom_call.1} parent=75 // pred_check_branch
          %699 = sbr.rel (%p697) target = $region84
        $region83: #{tpu_custom_call.1} parent=75 // pred_region
          %s700 = sand.u32 %s187, 1
          %s701 = scalar_lea.sflag [#allocation11], %s700
          %s702 = sand.u32 %s187, 1
          %s703 = smul.addr %s702, 4
          %s704 = scalar_lea.vmem [#allocation10], %s703
          %705 = dma.done %s701, 64
        $region84: #{tpu_custom_call.1} parent=75 // pred_fallthru
          _
      $region76: #{tpu_custom_call.1} parent=5 // pred_fallthru
        _
    $region6: #{tpu_custom_call.1} parent=1 // loop_footer
      %s27 = sadd.s32 1, %s23
    $region7: #{tpu_custom_call.1} parent=1 // loop_footer_branch
      %22 = sbr.rel target = $region3
    $region8: #{tpu_custom_call.1} parent=1 // loop_exit
      _
    %706 = vsyncpa [#allocation4], 1
    %s707 = scalar_lea.sflag [#allocation4], 1
    %708 = vsyncpa %s707, 1
    %709 = vsyncpa [#allocation7], 1
    %710 = vsyncpa [#allocation5], 1
    %s711 = scalar_lea.sflag [#allocation5], 1
    %712 = vsyncpa %s711, 1
    %713 = vsyncpa [#allocation11], 1
    %s714 = scalar_lea.sflag [#allocation11], 1
    %715 = vsyncpa %s714, 1

</llo_original>
